<compile_context>
chip_gen: v6e
topology: v6e:2x2x1
jax: 0.10.0
libtpu: 0.0.40
codegen_flags: <defaults>
</compile_context>

<pallas_src>
import functools

import jax
import jax.numpy as jnp
from jax import lax
from jax.experimental import pallas as pl
from jax.experimental.pallas import tpu as pltpu


def _atomic_energies_kernel(x_ref, w_rep_ref, o_ref, *, n_elems, op_dtype):
    # x_ref:     (tile_rows, 128*E)  packed nodes (128 nodes per lane-dense row)
    # w_rep_ref: (1, 128*E)          w_rep[c*E + e] = w[e]   (f32, grid-invariant)
    # o_ref:     (tile_rows, 128)    one energy per lane
    row_width = w_rep_ref.shape[-1]

    # Fold the weights into x on the VPU: lane-aligned broadcast multiply,
    # done in f32 so the (optional) bf16 rounding happens once, on x*w.
    xw = (x_ref[...].astype(jnp.float32) * w_rep_ref[...]).astype(op_dtype)

    # Weight-free 0/1 band matrix B[k, c] = 1 iff c*E <= k < (c+1)*E.
    # Rebuilt from iotas every step (a handful of VPU passes, hidden under the
    # input DMA) -> no scatter matrix in HBM and no scratch needing
    # megacore-unsafe "init on program_id == 0" logic.
    kk = lax.broadcasted_iota(jnp.int32, (row_width, 128), 0)
    cc = lax.broadcasted_iota(jnp.int32, (row_width, 128), 1)
    base = cc * n_elems
    band = jnp.logical_and(kk >= base, kk < base + n_elems).astype(op_dtype)

    # MXU contraction + lane compaction in one shot, f32 accumulation.
    o_ref[...] = jnp.dot(
        xw, band, preferred_element_type=jnp.float32).astype(o_ref.dtype)


def _auto_tile_rows(n_rows: int, bytes_per_row: int) -> int:
    """~4 MiB input blocks, but keep the grid multi-step when possible."""
    target = 4 << 20
    tr = max(8, ((target // max(1, bytes_per_row)) // 8) * 8)
    if n_rows < 8:
        return n_rows  # full extent (legal: equals the array dim)
    # >=4 grid steps when the node count permits (>=2 for small inputs):
    # lets BlockSpec double-buffering hide the DMA and gives v7x's two
    # TensorCores something to shard on the "parallel" axis.
    min_steps = 4 if n_rows >= 32 else 2
    cap = max(8, ((n_rows // min_steps) // 8) * 8)
    return min(tr, cap)


def _atomic_energies_packed(x_main, w_f32, out_dtype, tile_rows, mxu_bf16):
    """Run the Pallas kernel on the 128-node-aligned slab of x."""
    n_main, n_elems = x_main.shape
    assert n_main % 128 == 0 and n_main > 0
    n_rows = n_main // 128
    row_width = 128 * n_elems

    # Free row-major view: 128 nodes packed per lane-dense row.
    x_flat = x_main.reshape(n_rows, row_width)
    # Tiny (128*E f32, a few KiB) repeated-weight row; constant index_map ->
    # DMA'd once and resident across the whole grid.
    w_rep = jnp.tile(w_f32, 128).reshape(1, row_width)

    op_dtype = (jnp.bfloat16
                if (mxu_bf16 or x_main.dtype == jnp.bfloat16)
                else jnp.float32)

    bytes_per_row = row_width * x_flat.dtype.itemsize
    if tile_rows is None:
        tr = _auto_tile_rows(n_rows, bytes_per_row)
    else:
        tr = int(tile_rows)
        tr = n_rows if tr >= n_rows else max(8, (tr // 8) * 8)

    grid = (pl.cdiv(n_rows, tr),)

    kernel = functools.partial(
        _atomic_energies_kernel, n_elems=n_elems, op_dtype=op_dtype)

    out2d = pl.pallas_call(
        kernel,
        out_shape=jax.ShapeDtypeStruct((n_rows, 128), out_dtype),
        grid=grid,
        in_specs=[
            pl.BlockSpec((tr, row_width), lambda i: (i, 0)),
            pl.BlockSpec((1, row_width), lambda i: (0, 0)),   # resident weights
        ],
        out_specs=pl.BlockSpec((tr, 128), lambda i: (i, 0)),
        compiler_params=pltpu.CompilerParams(
            dimension_semantics=("parallel",),
            vmem_limit_bytes=32 * 1024 * 1024,
        ),
    )(x_flat, w_rep)

    # NOTE: the last grid step may read past n_rows (Pallas block padding);
    # safe because each output row depends only on its own input row.
    return out2d.reshape(n_main)


def atomic_energies_block(x: jax.Array, atomic_energies: jax.Array,
                          *, tile_rows: int | None = None,
                          mxu_bf16: bool = False) -> jax.Array:
    """Pallas equivalent of AtomicEnergiesBlock.forward: x @ atomic_energies."""
    assert x.ndim == 2 and atomic_energies.ndim == 1
    n_nodes, n_elems = x.shape
    assert atomic_energies.shape[0] == n_elems

    w_f32 = atomic_energies.astype(jnp.float32)            # parameters stay f32
    out_dtype = jnp.promote_types(x.dtype, jnp.float32)

    n_main = (n_nodes // 128) * 128
    tail = n_nodes - n_main

    pieces = []
    if n_main > 0:
        # Aligned prefix only (no full-array jnp.pad copy).  When there is no
        # tail this is the whole array and nothing is sliced at all.
        x_main = x if tail == 0 else x[:n_main]
        pieces.append(_atomic_energies_packed(
            x_main, w_f32, out_dtype, tile_rows, mxu_bf16))
    if tail > 0:
        # <=127-node epilogue: tiny plain-JAX matvec, kept in f32 to match the
        # reference semantics exactly.
        pieces.append(
            jnp.matmul(x[n_main:].astype(out_dtype), w_f32.astype(out_dtype)))
    if len(pieces) == 1:
        return pieces[0]
    return jnp.concatenate(pieces, axis=0)


if __name__ == "__main__":
    key = jax.random.PRNGKey(0)
    k_x, k_e, k_z = jax.random.split(key, 3)

    # Deliberately non-aligned node count: exercises the packed lane layout,
    # the multi-step pipelined grid, and the plain-JAX tail epilogue.
    n_nodes, n_elems = 1337, 7

    atomic_energies = jax.random.normal(k_e, (n_elems,), dtype=jnp.float32)
    x = jax.random.uniform(k_x, (n_nodes, n_elems), dtype=jnp.float32)
    ref = jnp.matmul(x, atomic_energies)

    # 1) f32 path, auto tile (multi-step grid at this size).
    out_auto = jax.block_until_ready(atomic_energies_block(x, atomic_energies))
    # 2) f32 path, forced small tile -> multi-step grid with a partial last block.
    out_tiled = jax.block_until_ready(
        atomic_energies_block(x, atomic_energies, tile_rows=8))

    assert out_auto.shape == (n_nodes,)
    assert out_tiled.shape == (n_nodes,)
    assert jnp.allclose(out_auto, ref, atol=1e-5, rtol=1e-5)
    assert jnp.allclose(out_tiled, ref, atol=1e-5, rtol=1e-5)

    # 3) bf16-MXU path on realistic one-hot node attributes (v5e fast path).
    #    The band matrix is exact in bf16 and w is folded into x in f32, so
    #    the result equals a matmul against bf16-rounded energies.
    n_hot = 384                                   # multiple of 128: pure kernel path
    elem_ids = jax.random.randint(k_z, (n_hot,), 0, n_elems)
    x_hot = jax.nn.one_hot(elem_ids, n_elems, dtype=jnp.float32)
    ref_hot = jnp.matmul(
        x_hot, atomic_energies.astype(jnp.bfloat16).astype(jnp.float32))
    out_hot = jax.block_until_ready(
        atomic_energies_block(x_hot, atomic_energies, mxu_bf16=True))
    assert out_hot.shape == (n_hot,)
    assert jnp.allclose(out_hot, ref_hot, atol=1e-5, rtol=1e-5)

    print("KERNEL_OK")
</pallas_src>

<mosaic_0001>
module attributes {stable_mosaic.version = 11 : i64} {
  func.func @_atomic_energies_kernel(%arg0: i32, %arg1: memref<8x896xf32, #tpu.memory_space<vmem>>, %arg2: memref<1x896xf32, #tpu.memory_space<vmem>>, %arg3: memref<8x128xf32, #tpu.memory_space<vmem>>) attributes {dimension_semantics = [#tpu.dimension_semantics<parallel>], iteration_bounds = array<i64: 2>, scalar_prefetch = 0 : i64, scratch_operands = 0 : i64, tpu.core_type = #tpu.core_type<tc>, window_params = [{transform_indices = @transform_0, window_bounds = array<i64: 8, 896>}, {pipeline_mode = #tpu.pipeline_mode<synchronous>, transform_indices = @transform_1, window_bounds = array<i64: 1, 896>}, {transform_indices = @transform_2, window_bounds = array<i64: 8, 128>}]} {
    %c0 = arith.constant 0 : index
    %c0_0 = arith.constant 0 : index
    %0 = vector.load %arg1[%c0, %c0_0] : memref<8x896xf32, #tpu.memory_space<vmem>>, vector<8x896xf32>
    %c0_1 = arith.constant 0 : index
    %c0_2 = arith.constant 0 : index
    %1 = vector.load %arg2[%c0_1, %c0_2] : memref<1x896xf32, #tpu.memory_space<vmem>>, vector<1x896xf32>
    %2 = vector.broadcast %1 : vector<1x896xf32> to vector<8x896xf32>
    %3 = arith.mulf %0, %2 : vector<8x896xf32>
    %4 = tpu.iota {dimensions = array<i32: 0>} : vector<896x128xi32>
    %5 = tpu.iota {dimensions = array<i32: 1>} : vector<896x128xi32>
    %c7_i32 = arith.constant 7 : i32
    %6 = vector.broadcast %c7_i32 : i32 to vector<896x128xi32>
    %7 = arith.muli %5, %6 : vector<896x128xi32>
    %8 = arith.cmpi sge, %4, %7 : vector<896x128xi32>
    %c7_i32_3 = arith.constant 7 : i32
    %9 = vector.broadcast %c7_i32_3 : i32 to vector<896x128xi32>
    %10 = arith.addi %7, %9 : vector<896x128xi32>
    %11 = arith.cmpi slt, %4, %10 : vector<896x128xi32>
    %12 = arith.andi %8, %11 : vector<896x128xi1>
    %13 = arith.extui %12 : vector<896x128xi1> to vector<896x128xi32>
    %14 = arith.sitofp %13 : vector<896x128xi32> to vector<896x128xf32>
    %cst = arith.constant dense<0.000000e+00> : vector<8x128xf32>
    %15 = tpu.matmul %3, %14, %cst {dimension_numbers = #tpu.dot_dimension_numbers<[1], [0], [0], [1], [0, 0, 1, 1], [], []>} : vector<8x896xf32>, vector<896x128xf32>, vector<8x128xf32> -> vector<8x128xf32>
    %c0_4 = arith.constant 0 : index
    %c0_5 = arith.constant 0 : index
    %16 = vector.load %arg3[%c0_4, %c0_5] : memref<8x128xf32, #tpu.memory_space<vmem>>, vector<8x128xf32>
    tpu.vector_store %arg3[%c0_4, %c0_5], %15 {strides = array<i32>} : memref<8x128xf32, #tpu.memory_space<vmem>>, vector<8x128xf32>,
    return
  }
  func.func @transform_0(%arg0: i32) -> (i32, i32) {
    %c0_i32 = arith.constant 0 : i32
    %c0_i32_0 = arith.constant 0 : i32
    return %arg0, %c0_i32 : i32, i32
  }
  func.func @transform_1(%arg0: i32) -> (i32, i32) {
    %c0_i32 = arith.constant 0 : i32
    %c0_i32_0 = arith.constant 0 : i32
    %c0_i32_1 = arith.constant 0 : i32
    return %c0_i32, %c0_i32_0 : i32, i32
  }
  func.func @transform_2(%arg0: i32) -> (i32, i32) {
    %c0_i32 = arith.constant 0 : i32
    %c0_i32_0 = arith.constant 0 : i32
    return %arg0, %c0_i32 : i32, i32
  }
}

</mosaic_0001>

<llo_original>
// kernel: tpu_custom_call.1
$region0: #{tpu_custom_call.1}
  #allocation0 [shape = 'u32[]', space=smem, size = 0x4, offset = 0x4, fixed_abs, tag = 'smem constant byte address 0x4 - core index']
  #allocation1 [shape = 'u32[144,128]{1,0:T(1,128)}', space=vmem, size = 0x12000, scoped, tag = 'internal scratch']
  %s0 = inlined_call_operand.hbm [shape: f32[10,896], index: 0, kind: input, shape index: {}]
  %s1 = inlined_call_operand.hbm [shape: f32[1,896], index: 1, kind: input, shape index: {}]
  %s2 = inlined_call_operand.hbm [shape: f32[10,128], index: 2, kind: output, shape index: {}]
  %s3 = sld [smem:[#allocation0]]
  $region49: #{tpu_custom_call.1} parent=0
    _
  %s5 = ssub.s32 1, %s3
  %s6 = scalar_select 0, %s5, %s3
  $region1: #{tpu_custom_call.1} parent=0
    #allocation2 [shape = 'u8[57344]{0}', space=vmem, size = 0xe000, scoped, tag = 'input window, operand 0']
    #allocation3 [shape = 's32[2]{0}', space=sflag, size = 0x8, scoped, tag = 'scoped memory for tpu_custom_call.1']
    #allocation4 [shape = 's32[2]{0}', space=sflag, size = 0x8, scoped, tag = 'scoped memory for tpu_custom_call.1']
    #allocation5 [shape = 'u8[3584]{0}', space=vmem, size = 0x1000, scoped, tag = 'input window, operand 1, single buffered']
    #allocation6 [shape = 's32[1]{0}', space=sflag, size = 0x4, scoped, tag = 'scoped memory for tpu_custom_call.1']
    #allocation7 [shape = 'u8[8192]{0}', space=vmem, size = 0x2000, scoped, tag = 'output window, operand 0']
    %7 = vsyncpa [#allocation3], 0
    %s8 = scalar_lea.sflag [#allocation3], 1
    %9 = vsyncpa %s8, 0
    %10 = vsyncpa [#allocation6], 0
    %11 = vsyncpa [#allocation4], 0
    %s12 = scalar_lea.sflag [#allocation4], 1
    %13 = vsyncpa %s12, 0
    loop: start=0, step=1, limit=4
    $region2: #{tpu_custom_call.1} parent=1 // loop_pre_header
      _
    $region3: #{tpu_custom_call.1} parent=1 // loop_header
      %s15 = sphi 0, %s19
      %p16 = scmp.ge.s32.totalorder %s15, 4
      %s25 = sphi 0, %s27
      %s28 = sphi 0, %s25
      %s29 = sphi 0, %s28
      %s45 = sphi 0, %s29
      %s49 = sphi 0, %s49
      %s51 = sphi 0, %s49
      %s52 = sphi 0, %s51
      %s66 = sphi 0, %s52
      %s72 = sphi 0, %s74
      %s75 = sphi 0, %s72
      %s76 = sphi 0, %s75
      %s92 = sphi 0, %s76
    $region4: #{tpu_custom_call.1} parent=1 // loop_header_branch
      %18 = sbr.rel (%p16) target = $region8
    $region5: #{tpu_custom_call.1} parent=1 // loop_body
      %s20 = ssub.s32 %s15, 1
      %s21 = ssub.s32 %s15, 2
      %s22 = sadd.s32 %s15, 1
      %s23 = ssub.s32 %s15, %s22
      %p24 = scmp.eq.s32.totalorder %s23, 0
      %s26 = sadd.s32 %s25, 1
      %s27 = scalar_select %p24, %s25, %s26
      %p30 = pneg %p24
      %p31 = scmp.eq.s32.totalorder %s15, 1
      %p32 = por %p30, %p31
      %p33 = scmp.ne.s32.totalorder %s25, %s28
      %p34 = scmp.eq.s32.totalorder %s15, 0
      %p35 = por %p33, %p34
      %p36 = scmp.ne.s32.totalorder %s25, %s28
      %p37 = scmp.eq.s32.totalorder %s20, 1
      %p38 = por %p36, %p37
      %p39 = scmp.ne.s32.totalorder %s28, %s29
      %p40 = scmp.eq.s32.totalorder %s20, 0
      %p41 = por %p39, %p40
      %p42 = scmp.ne.s32.totalorder %s28, %s29
      %p43 = scmp.eq.s32.totalorder %s21, 1
      %p44 = por %p42, %p43
      %p46 = scmp.ne.s32.totalorder %s29, %s45
      %p47 = scmp.eq.s32.totalorder %s21, 0
      %p48 = por %p46, %p47
      %s50 = sadd.s32 %s49, 1
      %p53 = scmp.eq.s32.totalorder %s15, 1
      %p54 = scmp.ne.s32.totalorder %s49, %s51
      %p55 = scmp.eq.s32.totalorder %s15, 0
      %p56 = por %p54, %p55
      %p57 = scmp.ne.s32.totalorder %s49, %s51
      %p58 = scmp.eq.s32.totalorder %s20, 1
      %p59 = por %p57, %p58
      %p60 = scmp.ne.s32.totalorder %s51, %s52
      %p61 = scmp.eq.s32.totalorder %s20, 0
      %p62 = por %p60, %p61
      %p63 = scmp.ne.s32.totalorder %s51, %s52
      %p64 = scmp.eq.s32.totalorder %s21, 1
      %p65 = por %p63, %p64
      %p67 = scmp.ne.s32.totalorder %s52, %s66
      %p68 = scmp.eq.s32.totalorder %s21, 0
      %p69 = por %p67, %p68
      %s70 = ssub.s32 %s15, %s22
      %p71 = scmp.eq.s32.totalorder %s70, 0
      %s73 = sadd.s32 %s72, 1
      %s74 = scalar_select %p71, %s72, %s73
      %p77 = pneg %p71
      %p78 = scmp.eq.s32.totalorder %s15, 1
      %p79 = por %p77, %p78
      %p80 = scmp.ne.s32.totalorder %s72, %s75
      %p81 = scmp.eq.s32.totalorder %s15, 0
      %p82 = por %p80, %p81
      %p83 = scmp.ne.s32.totalorder %s72, %s75
      %p84 = scmp.eq.s32.totalorder %s20, 1
      %p85 = por %p83, %p84
      %p86 = scmp.ne.s32.totalorder %s75, %s76
      %p87 = scmp.eq.s32.totalorder %s20, 0
      %p88 = por %p86, %p87
      %p89 = scmp.ne.s32.totalorder %s75, %s76
      %p90 = scmp.eq.s32.totalorder %s21, 1
      %p91 = por %p89, %p90
      %p93 = scmp.ne.s32.totalorder %s76, %s92
      %p94 = scmp.eq.s32.totalorder %s21, 0
      %p95 = por %p93, %p94
      %p96 = scmp.le.s32.totalorder 1, %s15
      %p97 = scmp.lt.s32.totalorder %s15, 3
      %p98 = pnand %p96, %p97
      %p99 = pneg %p98
      // Predicated region
      $region9: #{tpu_custom_call.1} parent=5 // pred_check
        _
      $region10: #{tpu_custom_call.1} parent=5 // pred_check_branch
        %101 = sbr.rel (%p98) target = $region12
      $region11: #{tpu_custom_call.1} parent=5 // pred_region
        %s102 = ssub.s32 %s15, 1
        // Predicated region
        $region13: #{tpu_custom_call.1} parent=11 // pred_check
          %p103 = pneg %p62
        $region14: #{tpu_custom_call.1} parent=11 // pred_check_branch
          %105 = sbr.rel (%p103) target = $region16
        $region15: #{tpu_custom_call.1} parent=11 // pred_region
          %s107 = ssub.s32 112, 112
          %108 = vsyncadd [#allocation6], %s107
          %s110 = sshll.u32 [#allocation5], 4
          %s111 = int_to_ptr.vmem [resolvable:$true] %s110
          %113 = dma.hbm_to_vmem [thread:$0]  %s1, 112, %s111, [#allocation6]
        $region16: #{tpu_custom_call.1} parent=11 // pred_fallthru
          _
      $region12: #{tpu_custom_call.1} parent=5 // pred_fallthru
        _
      %p114 = scmp.lt.s32.totalorder %s15, 2
      // Predicated region
      $region17: #{tpu_custom_call.1} parent=5 // pred_check
        %p115 = pneg %p114
      $region18: #{tpu_custom_call.1} parent=5 // pred_check_branch
        %117 = sbr.rel (%p115) target = $region20
      $region19: #{tpu_custom_call.1} parent=5 // pred_region
        // Predicated region
        $region21: #{tpu_custom_call.1} parent=19 // pred_check
          %p118 = pneg %p35
        $region22: #{tpu_custom_call.1} parent=19 // pred_check_branch
          %120 = sbr.rel (%p118) target = $region24
        $region23: #{tpu_custom_call.1} parent=19 // pred_region
          %s121 = sand.u32 %s25, 1
          %s122 = scalar_lea.sflag [#allocation3], %s121
          %s123 = sand.u32 %s25, 1
          %s124 = smul.addr %s123, 56
          %s125 = scalar_lea.vmem [#allocation2], %s124
          %s127 = ssub.s32 896, 896
          %128 = vsyncadd %s122, %s127
          %s129 = smul.addr %s15, 7
          %s130 = smul.addr %s129, 128
          %s131 = scalar_lea.hbm %s0, %s130
          %s133 = sshll.u32 %s125, 4
          %s134 = int_to_ptr.vmem [resolvable:$true] %s133
          %136 = dma.hbm_to_vmem [thread:$0]  %s131, 896, %s134, %s122
        $region24: #{tpu_custom_call.1} parent=19 // pred_fallthru
          _
      $region20: #{tpu_custom_call.1} parent=5 // pred_fallthru
        _
      %p137 = scmp.le.s32.totalorder 1, %s15
      %p138 = scmp.lt.s32.totalorder %s15, 3
      %p139 = pnand %p137, %p138
      %p140 = pneg %p139
      // Predicated region
      $region25: #{tpu_custom_call.1} parent=5 // pred_check
        _
      $region26: #{tpu_custom_call.1} parent=5 // pred_check_branch
        %142 = sbr.rel (%p139) target = $region28
      $region27: #{tpu_custom_call.1} parent=5 // pred_region
        %s143 = ssub.s32 %s15, 1
        %s144 = sand.u32 %s28, 1
        %s145 = scalar_lea.sflag [#allocation3], %s144
        %s146 = sand.u32 %s28, 1
        %s147 = smul.addr %s146, 56
        %s148 = scalar_lea.vmem [#allocation2], %s147
        // Predicated region
        $region29: #{tpu_custom_call.1} parent=27 // pred_check
          %p149 = pneg %p41
        $region30: #{tpu_custom_call.1} parent=27 // pred_check_branch
          %151 = sbr.rel (%p149) target = $region32
        $region31: #{tpu_custom_call.1} parent=27 // pred_region
          %152 = dma.done %s145, 896
        $region32: #{tpu_custom_call.1} parent=27 // pred_fallthru
          _
        // Predicated region
        $region33: #{tpu_custom_call.1} parent=27 // pred_check
          %p153 = pneg %p62
        $region34: #{tpu_custom_call.1} parent=27 // pred_check_branch
          %155 = sbr.rel (%p153) target = $region36
        $region35: #{tpu_custom_call.1} parent=27 // pred_region
          %156 = dma.done [#allocation6], 112
        $region36: #{tpu_custom_call.1} parent=27 // pred_fallthru
          _
        %s157 = sand.u32 %s28, 1
        %s158 = scalar_lea.sflag [#allocation3], %s157
        %s159 = sand.u32 %s28, 1
        %s160 = smul.addr %s159, 56
        %s161 = scalar_lea.vmem [#allocation2], %s160
        %p162 = pneg %p41
        %p163 = pneg %p38
        %p164 = pneg %p62
        %p165 = pneg %p59
        %p166 = pneg %p88
        %p167 = pneg %p85
        %s168 = sand.u32 %s75, 1
        %s169 = scalar_lea.sflag [#allocation4], %s168
        %s170 = sand.u32 %s75, 1
        %s171 = smul.addr %s170, 8
        %s172 = scalar_lea.vmem [#allocation7], %s171
        %v173 = vld [vmem:[%s148] sm:$0xff]
        %v174 = vld [vmem:[%s148 + $0x8] sm:$0xff]
        %v175 = vld [vmem:[%s148 + $0x10] sm:$0xff]
        %v176 = vld [vmem:[%s148 + $0x18] sm:$0xff]
        %v177 = vld [vmem:[%s148 + $0x20] sm:$0xff]
        %v178 = vld [vmem:[%s148 + $0x28] sm:$0xff]
        %v179 = vld [vmem:[%s148 + $0x30] sm:$0xff]
        %v180 = vld [vmem:[#allocation5] sm:$0xff]
        %v182 = vlaneseq
        %v183 = vshrl.u32 %v182, 7
        %v184 = vsub.s32 0, %v183
        %v185 = vrot.slane %v180, %v184
        %v186 = vlaneseq
        %v187 = vshrl.u32 %v186, 7
        %v188 = vsub.s32 1, %v187
        %v189 = vrot.slane %v180, %v188
        %v190 = vlaneseq
        %v191 = vshrl.u32 %v190, 7
        %v192 = vsub.s32 2, %v191
        %v193 = vrot.slane %v180, %v192
        %v194 = vlaneseq
        %v195 = vshrl.u32 %v194, 7
        %v196 = vsub.s32 3, %v195
        %v197 = vrot.slane %v180, %v196
        %v198 = vlaneseq
        %v199 = vshrl.u32 %v198, 7
        %v200 = vsub.s32 4, %v199
        %v201 = vrot.slane %v180, %v200
        %v202 = vlaneseq
        %v203 = vshrl.u32 %v202, 7
        %v204 = vsub.s32 5, %v203
        %v205 = vrot.slane %v180, %v204
        %v206 = vlaneseq
        %v207 = vshrl.u32 %v206, 7
        %v208 = vsub.s32 6, %v207
        %v209 = vrot.slane %v180, %v208
        %v217 = vmul.f32 %v173, %v185
        %v218 = vmul.f32 %v174, %v189
        %v219 = vmul.f32 %v175, %v193
        %v220 = vmul.f32 %v176, %v197
        %v221 = vmul.f32 %v177, %v201
        %v222 = vmul.f32 %v178, %v205
        %v223 = vmul.f32 %v179, %v209
        %v224 = vlaneseq
        %v225 = vshrl.u32 %v224, 7
        %v226 = vadd.s32 %v225, 8
        %v227 = vadd.s32 %v225, 16
        %v228 = vadd.s32 %v225, 24
        %v229 = vadd.s32 %v225, 32
        %v230 = vadd.s32 %v225, 40
        %v231 = vadd.s32 %v225, 48
        %v232 = vadd.s32 %v225, 56
        %v233 = vadd.s32 %v225, 64
        %v234 = vadd.s32 %v225, 72
        %v235 = vadd.s32 %v225, 80
        %v236 = vadd.s32 %v225, 88
        %v237 = vadd.s32 %v225, 96
        %v238 = vadd.s32 %v225, 104
        %v239 = vadd.s32 %v225, 112
        %v240 = vadd.s32 %v225, 120
        %v241 = vadd.s32 %v225, 128
        %v242 = vadd.s32 %v225, 136
        %v243 = vadd.s32 %v225, 144
        %v244 = vadd.s32 %v225, 152
        %v245 = vadd.s32 %v225, 160
        %v246 = vadd.s32 %v225, 168
        %v247 = vadd.s32 %v225, 176
        %v248 = vadd.s32 %v225, 184
        %v249 = vadd.s32 %v225, 192
        %v250 = vadd.s32 %v225, 200
        %v251 = vadd.s32 %v225, 208
        %v252 = vadd.s32 %v225, 216
        %v253 = vadd.s32 %v225, 224
        %v254 = vadd.s32 %v225, 232
        %v255 = vadd.s32 %v225, 240
        %v256 = vadd.s32 %v225, 248
        %v257 = vadd.s32 %v225, 256
        %v258 = vadd.s32 %v225, 264
        %v259 = vadd.s32 %v225, 272
        %v260 = vadd.s32 %v225, 280
        %v261 = vadd.s32 %v225, 288
        %v262 = vadd.s32 %v225, 296
        %v263 = vadd.s32 %v225, 304
        %v264 = vadd.s32 %v225, 312
        %v265 = vadd.s32 %v225, 320
        %v266 = vadd.s32 %v225, 328
        %v267 = vadd.s32 %v225, 336
        %v268 = vadd.s32 %v225, 344
        %v269 = vadd.s32 %v225, 352
        %v270 = vadd.s32 %v225, 360
        %v271 = vadd.s32 %v225, 368
        %v272 = vadd.s32 %v225, 376
        %v273 = vadd.s32 %v225, 384
        %v274 = vadd.s32 %v225, 392
        %v275 = vadd.s32 %v225, 400
        %v276 = vadd.s32 %v225, 408
        %v277 = vadd.s32 %v225, 416
        %v278 = vadd.s32 %v225, 424
        %v279 = vadd.s32 %v225, 432
        %v280 = vadd.s32 %v225, 440
        %v281 = vadd.s32 %v225, 448
        %v282 = vadd.s32 %v225, 456
        %v283 = vadd.s32 %v225, 464
        %v284 = vadd.s32 %v225, 472
        %v285 = vadd.s32 %v225, 480
        %v286 = vadd.s32 %v225, 488
        %v287 = vadd.s32 %v225, 496
        %v288 = vadd.s32 %v225, 504
        %v289 = vadd.s32 %v225, 512
        %v290 = vadd.s32 %v225, 520
        %v291 = vadd.s32 %v225, 528
        %v292 = vadd.s32 %v225, 536
        %v293 = vadd.s32 %v225, 544
        %v294 = vadd.s32 %v225, 552
        %v295 = vadd.s32 %v225, 560
        %v296 = vadd.s32 %v225, 568
        %v297 = vadd.s32 %v225, 576
        %v298 = vadd.s32 %v225, 584
        %v299 = vadd.s32 %v225, 592
        %v300 = vadd.s32 %v225, 600
        %v301 = vadd.s32 %v225, 608
        %v302 = vadd.s32 %v225, 616
        %v303 = vadd.s32 %v225, 624
        %v304 = vadd.s32 %v225, 632
        %v305 = vadd.s32 %v225, 640
        %v306 = vadd.s32 %v225, 648
        %v307 = vadd.s32 %v225, 656
        %v308 = vadd.s32 %v225, 664
        %v309 = vadd.s32 %v225, 672
        %v310 = vadd.s32 %v225, 680
        %v311 = vadd.s32 %v225, 688
        %v312 = vadd.s32 %v225, 696
        %v313 = vadd.s32 %v225, 704
        %v314 = vadd.s32 %v225, 712
        %v315 = vadd.s32 %v225, 720
        %v316 = vadd.s32 %v225, 728
        %v317 = vadd.s32 %v225, 736
        %v318 = vadd.s32 %v225, 744
        %v319 = vadd.s32 %v225, 752
        %v320 = vadd.s32 %v225, 760
        %v321 = vadd.s32 %v225, 768
        %v322 = vadd.s32 %v225, 776
        %v323 = vadd.s32 %v225, 784
        %v324 = vadd.s32 %v225, 792
        %v325 = vadd.s32 %v225, 800
        %v326 = vadd.s32 %v225, 808
        %v327 = vadd.s32 %v225, 816
        %v328 = vadd.s32 %v225, 824
        %v329 = vadd.s32 %v225, 832
        %v330 = vadd.s32 %v225, 840
        %v331 = vadd.s32 %v225, 848
        %v332 = vadd.s32 %v225, 856
        %v333 = vadd.s32 %v225, 864
        %v334 = vadd.s32 %v225, 872
        %v335 = vadd.s32 %v225, 880
        %v336 = vadd.s32 %v225, 888
        %v337 = vlaneseq
        %v338 = vand.u32 %v337, 127
        %v339 = vmul.u32 %v338, 7
        %vm340 = vcmp.ge.s32.totalorder %v225, %v339
        %vm341 = vcmp.ge.s32.totalorder %v226, %v339
        %vm342 = vcmp.ge.s32.totalorder %v227, %v339
        %vm343 = vcmp.ge.s32.totalorder %v228, %v339
        %vm344 = vcmp.ge.s32.totalorder %v229, %v339
        %vm345 = vcmp.ge.s32.totalorder %v230, %v339
        %vm346 = vcmp.ge.s32.totalorder %v231, %v339
        %vm347 = vcmp.ge.s32.totalorder %v232, %v339
        %vm348 = vcmp.ge.s32.totalorder %v233, %v339
        %vm349 = vcmp.ge.s32.totalorder %v234, %v339
        %vm350 = vcmp.ge.s32.totalorder %v235, %v339
        %vm351 = vcmp.ge.s32.totalorder %v236, %v339
        %vm352 = vcmp.ge.s32.totalorder %v237, %v339
        %vm353 = vcmp.ge.s32.totalorder %v238, %v339
        %vm354 = vcmp.ge.s32.totalorder %v239, %v339
        %vm355 = vcmp.ge.s32.totalorder %v240, %v339
        %vm356 = vcmp.ge.s32.totalorder %v241, %v339
        %vm357 = vcmp.ge.s32.totalorder %v242, %v339
        %vm358 = vcmp.ge.s32.totalorder %v243, %v339
        %vm359 = vcmp.ge.s32.totalorder %v244, %v339
        %vm360 = vcmp.ge.s32.totalorder %v245, %v339
        %vm361 = vcmp.ge.s32.totalorder %v246, %v339
        %vm362 = vcmp.ge.s32.totalorder %v247, %v339
        %vm363 = vcmp.ge.s32.totalorder %v248, %v339
        %vm364 = vcmp.ge.s32.totalorder %v249, %v339
        %vm365 = vcmp.ge.s32.totalorder %v250, %v339
        %vm366 = vcmp.ge.s32.totalorder %v251, %v339
        %vm367 = vcmp.ge.s32.totalorder %v252, %v339
        %vm368 = vcmp.ge.s32.totalorder %v253, %v339
        %vm369 = vcmp.ge.s32.totalorder %v254, %v339
        %vm370 = vcmp.ge.s32.totalorder %v255, %v339
        %vm371 = vcmp.ge.s32.totalorder %v256, %v339
        %vm372 = vcmp.ge.s32.totalorder %v257, %v339
        %vm373 = vcmp.ge.s32.totalorder %v258, %v339
        %vm374 = vcmp.ge.s32.totalorder %v259, %v339
        %vm375 = vcmp.ge.s32.totalorder %v260, %v339
        %vm376 = vcmp.ge.s32.totalorder %v261, %v339
        %vm377 = vcmp.ge.s32.totalorder %v262, %v339
        %vm378 = vcmp.ge.s32.totalorder %v263, %v339
        %vm379 = vcmp.ge.s32.totalorder %v264, %v339
        %vm380 = vcmp.ge.s32.totalorder %v265, %v339
        %vm381 = vcmp.ge.s32.totalorder %v266, %v339
        %vm382 = vcmp.ge.s32.totalorder %v267, %v339
        %vm383 = vcmp.ge.s32.totalorder %v268, %v339
        %vm384 = vcmp.ge.s32.totalorder %v269, %v339
        %vm385 = vcmp.ge.s32.totalorder %v270, %v339
        %vm386 = vcmp.ge.s32.totalorder %v271, %v339
        %vm387 = vcmp.ge.s32.totalorder %v272, %v339
        %vm388 = vcmp.ge.s32.totalorder %v273, %v339
        %vm389 = vcmp.ge.s32.totalorder %v274, %v339
        %vm390 = vcmp.ge.s32.totalorder %v275, %v339
        %vm391 = vcmp.ge.s32.totalorder %v276, %v339
        %vm392 = vcmp.ge.s32.totalorder %v277, %v339
        %vm393 = vcmp.ge.s32.totalorder %v278, %v339
        %vm394 = vcmp.ge.s32.totalorder %v279, %v339
        %vm395 = vcmp.ge.s32.totalorder %v280, %v339
        %vm396 = vcmp.ge.s32.totalorder %v281, %v339
        %vm397 = vcmp.ge.s32.totalorder %v282, %v339
        %vm398 = vcmp.ge.s32.totalorder %v283, %v339
        %vm399 = vcmp.ge.s32.totalorder %v284, %v339
        %vm400 = vcmp.ge.s32.totalorder %v285, %v339
        %vm401 = vcmp.ge.s32.totalorder %v286, %v339
        %vm402 = vcmp.ge.s32.totalorder %v287, %v339
        %vm403 = vcmp.ge.s32.totalorder %v288, %v339
        %vm404 = vcmp.ge.s32.totalorder %v289, %v339
        %vm405 = vcmp.ge.s32.totalorder %v290, %v339
        %vm406 = vcmp.ge.s32.totalorder %v291, %v339
        %vm407 = vcmp.ge.s32.totalorder %v292, %v339
        %vm408 = vcmp.ge.s32.totalorder %v293, %v339
        %vm409 = vcmp.ge.s32.totalorder %v294, %v339
        %vm410 = vcmp.ge.s32.totalorder %v295, %v339
        %vm411 = vcmp.ge.s32.totalorder %v296, %v339
        %vm412 = vcmp.ge.s32.totalorder %v297, %v339
        %vm413 = vcmp.ge.s32.totalorder %v298, %v339
        %vm414 = vcmp.ge.s32.totalorder %v299, %v339
        %vm415 = vcmp.ge.s32.totalorder %v300, %v339
        %vm416 = vcmp.ge.s32.totalorder %v301, %v339
        %vm417 = vcmp.ge.s32.totalorder %v302, %v339
        %vm418 = vcmp.ge.s32.totalorder %v303, %v339
        %vm419 = vcmp.ge.s32.totalorder %v304, %v339
        %vm420 = vcmp.ge.s32.totalorder %v305, %v339
        %vm421 = vcmp.ge.s32.totalorder %v306, %v339
        %vm422 = vcmp.ge.s32.totalorder %v307, %v339
        %vm423 = vcmp.ge.s32.totalorder %v308, %v339
        %vm424 = vcmp.ge.s32.totalorder %v309, %v339
        %vm425 = vcmp.ge.s32.totalorder %v310, %v339
        %vm426 = vcmp.ge.s32.totalorder %v311, %v339
        %vm427 = vcmp.ge.s32.totalorder %v312, %v339
        %vm428 = vcmp.ge.s32.totalorder %v313, %v339
        %vm429 = vcmp.ge.s32.totalorder %v314, %v339
        %vm430 = vcmp.ge.s32.totalorder %v315, %v339
        %vm431 = vcmp.ge.s32.totalorder %v316, %v339
        %vm432 = vcmp.ge.s32.totalorder %v317, %v339
        %vm433 = vcmp.ge.s32.totalorder %v318, %v339
        %vm434 = vcmp.ge.s32.totalorder %v319, %v339
        %vm435 = vcmp.ge.s32.totalorder %v320, %v339
        %vm436 = vcmp.ge.s32.totalorder %v321, %v339
        %vm437 = vcmp.ge.s32.totalorder %v322, %v339
        %vm438 = vcmp.ge.s32.totalorder %v323, %v339
        %vm439 = vcmp.ge.s32.totalorder %v324, %v339
        %vm440 = vcmp.ge.s32.totalorder %v325, %v339
        %vm441 = vcmp.ge.s32.totalorder %v326, %v339
        %vm442 = vcmp.ge.s32.totalorder %v327, %v339
        %vm443 = vcmp.ge.s32.totalorder %v328, %v339
        %vm444 = vcmp.ge.s32.totalorder %v329, %v339
        %vm445 = vcmp.ge.s32.totalorder %v330, %v339
        %vm446 = vcmp.ge.s32.totalorder %v331, %v339
        %vm447 = vcmp.ge.s32.totalorder %v332, %v339
        %vm448 = vcmp.ge.s32.totalorder %v333, %v339
        %vm449 = vcmp.ge.s32.totalorder %v334, %v339
        %vm450 = vcmp.ge.s32.totalorder %v335, %v339
        %vm451 = vcmp.ge.s32.totalorder %v336, %v339
        %v452 = vadd.s32 %v339, 7
        %vm453 = vcmp.lt.s32.totalorder %v225, %v452
        %vm454 = vcmp.lt.s32.totalorder %v226, %v452
        %vm455 = vcmp.lt.s32.totalorder %v227, %v452
        %vm456 = vcmp.lt.s32.totalorder %v228, %v452
        %vm457 = vcmp.lt.s32.totalorder %v229, %v452
        %vm458 = vcmp.lt.s32.totalorder %v230, %v452
        %vm459 = vcmp.lt.s32.totalorder %v231, %v452
        %vm460 = vcmp.lt.s32.totalorder %v232, %v452
        %vm461 = vcmp.lt.s32.totalorder %v233, %v452
        %vm462 = vcmp.lt.s32.totalorder %v234, %v452
        %vm463 = vcmp.lt.s32.totalorder %v235, %v452
        %vm464 = vcmp.lt.s32.totalorder %v236, %v452
        %vm465 = vcmp.lt.s32.totalorder %v237, %v452
        %vm466 = vcmp.lt.s32.totalorder %v238, %v452
        %vm467 = vcmp.lt.s32.totalorder %v239, %v452
        %vm468 = vcmp.lt.s32.totalorder %v240, %v452
        %vm469 = vcmp.lt.s32.totalorder %v241, %v452
        %vm470 = vcmp.lt.s32.totalorder %v242, %v452
        %vm471 = vcmp.lt.s32.totalorder %v243, %v452
        %vm472 = vcmp.lt.s32.totalorder %v244, %v452
        %vm473 = vcmp.lt.s32.totalorder %v245, %v452
        %vm474 = vcmp.lt.s32.totalorder %v246, %v452
        %vm475 = vcmp.lt.s32.totalorder %v247, %v452
        %vm476 = vcmp.lt.s32.totalorder %v248, %v452
        %vm477 = vcmp.lt.s32.totalorder %v249, %v452
        %vm478 = vcmp.lt.s32.totalorder %v250, %v452
        %vm479 = vcmp.lt.s32.totalorder %v251, %v452
        %vm480 = vcmp.lt.s32.totalorder %v252, %v452
        %vm481 = vcmp.lt.s32.totalorder %v253, %v452
        %vm482 = vcmp.lt.s32.totalorder %v254, %v452
        %vm483 = vcmp.lt.s32.totalorder %v255, %v452
        %vm484 = vcmp.lt.s32.totalorder %v256, %v452
        %vm485 = vcmp.lt.s32.totalorder %v257, %v452
        %vm486 = vcmp.lt.s32.totalorder %v258, %v452
        %vm487 = vcmp.lt.s32.totalorder %v259, %v452
        %vm488 = vcmp.lt.s32.totalorder %v260, %v452
        %vm489 = vcmp.lt.s32.totalorder %v261, %v452
        %vm490 = vcmp.lt.s32.totalorder %v262, %v452
        %vm491 = vcmp.lt.s32.totalorder %v263, %v452
        %vm492 = vcmp.lt.s32.totalorder %v264, %v452
        %vm493 = vcmp.lt.s32.totalorder %v265, %v452
        %vm494 = vcmp.lt.s32.totalorder %v266, %v452
        %vm495 = vcmp.lt.s32.totalorder %v267, %v452
        %vm496 = vcmp.lt.s32.totalorder %v268, %v452
        %vm497 = vcmp.lt.s32.totalorder %v269, %v452
        %vm498 = vcmp.lt.s32.totalorder %v270, %v452
        %vm499 = vcmp.lt.s32.totalorder %v271, %v452
        %vm500 = vcmp.lt.s32.totalorder %v272, %v452
        %vm501 = vcmp.lt.s32.totalorder %v273, %v452
        %vm502 = vcmp.lt.s32.totalorder %v274, %v452
        %vm503 = vcmp.lt.s32.totalorder %v275, %v452
        %vm504 = vcmp.lt.s32.totalorder %v276, %v452
        %vm505 = vcmp.lt.s32.totalorder %v277, %v452
        %vm506 = vcmp.lt.s32.totalorder %v278, %v452
        %vm507 = vcmp.lt.s32.totalorder %v279, %v452
        %vm508 = vcmp.lt.s32.totalorder %v280, %v452
        %vm509 = vcmp.lt.s32.totalorder %v281, %v452
        %vm510 = vcmp.lt.s32.totalorder %v282, %v452
        %vm511 = vcmp.lt.s32.totalorder %v283, %v452
        %vm512 = vcmp.lt.s32.totalorder %v284, %v452
        %vm513 = vcmp.lt.s32.totalorder %v285, %v452
        %vm514 = vcmp.lt.s32.totalorder %v286, %v452
        %vm515 = vcmp.lt.s32.totalorder %v287, %v452
        %vm516 = vcmp.lt.s32.totalorder %v288, %v452
        %vm517 = vcmp.lt.s32.totalorder %v289, %v452
        %vm518 = vcmp.lt.s32.totalorder %v290, %v452
        %vm519 = vcmp.lt.s32.totalorder %v291, %v452
        %vm520 = vcmp.lt.s32.totalorder %v292, %v452
        %vm521 = vcmp.lt.s32.totalorder %v293, %v452
        %vm522 = vcmp.lt.s32.totalorder %v294, %v452
        %vm523 = vcmp.lt.s32.totalorder %v295, %v452
        %vm524 = vcmp.lt.s32.totalorder %v296, %v452
        %vm525 = vcmp.lt.s32.totalorder %v297, %v452
        %vm526 = vcmp.lt.s32.totalorder %v298, %v452
        %vm527 = vcmp.lt.s32.totalorder %v299, %v452
        %vm528 = vcmp.lt.s32.totalorder %v300, %v452
        %vm529 = vcmp.lt.s32.totalorder %v301, %v452
        %vm530 = vcmp.lt.s32.totalorder %v302, %v452
        %vm531 = vcmp.lt.s32.totalorder %v303, %v452
        %vm532 = vcmp.lt.s32.totalorder %v304, %v452
        %vm533 = vcmp.lt.s32.totalorder %v305, %v452
        %vm534 = vcmp.lt.s32.totalorder %v306, %v452
        %vm535 = vcmp.lt.s32.totalorder %v307, %v452
        %vm536 = vcmp.lt.s32.totalorder %v308, %v452
        %vm537 = vcmp.lt.s32.totalorder %v309, %v452
        %vm538 = vcmp.lt.s32.totalorder %v310, %v452
        %vm539 = vcmp.lt.s32.totalorder %v311, %v452
        %vm540 = vcmp.lt.s32.totalorder %v312, %v452
        %vm541 = vcmp.lt.s32.totalorder %v313, %v452
        %vm542 = vcmp.lt.s32.totalorder %v314, %v452
        %vm543 = vcmp.lt.s32.totalorder %v315, %v452
        %vm544 = vcmp.lt.s32.totalorder %v316, %v452
        %vm545 = vcmp.lt.s32.totalorder %v317, %v452
        %vm546 = vcmp.lt.s32.totalorder %v318, %v452
        %vm547 = vcmp.lt.s32.totalorder %v319, %v452
        %vm548 = vcmp.lt.s32.totalorder %v320, %v452
        %vm549 = vcmp.lt.s32.totalorder %v321, %v452
        %vm550 = vcmp.lt.s32.totalorder %v322, %v452
        %vm551 = vcmp.lt.s32.totalorder %v323, %v452
        %vm552 = vcmp.lt.s32.totalorder %v324, %v452
        %vm553 = vcmp.lt.s32.totalorder %v325, %v452
        %vm554 = vcmp.lt.s32.totalorder %v326, %v452
        %vm555 = vcmp.lt.s32.totalorder %v327, %v452
        %vm556 = vcmp.lt.s32.totalorder %v328, %v452
        %vm557 = vcmp.lt.s32.totalorder %v329, %v452
        %vm558 = vcmp.lt.s32.totalorder %v330, %v452
        %vm559 = vcmp.lt.s32.totalorder %v331, %v452
        %vm560 = vcmp.lt.s32.totalorder %v332, %v452
        %vm561 = vcmp.lt.s32.totalorder %v333, %v452
        %vm562 = vcmp.lt.s32.totalorder %v334, %v452
        %vm563 = vcmp.lt.s32.totalorder %v335, %v452
        %vm564 = vcmp.lt.s32.totalorder %v336, %v452
        %vm565 = vmand %vm340, %vm453
        %vm566 = vmand %vm341, %vm454
        %vm567 = vmand %vm342, %vm455
        %vm568 = vmand %vm343, %vm456
        %vm569 = vmand %vm344, %vm457
        %vm570 = vmand %vm345, %vm458
        %vm571 = vmand %vm346, %vm459
        %vm572 = vmand %vm347, %vm460
        %vm573 = vmand %vm348, %vm461
        %vm574 = vmand %vm349, %vm462
        %vm575 = vmand %vm350, %vm463
        %vm576 = vmand %vm351, %vm464
        %vm577 = vmand %vm352, %vm465
        %vm578 = vmand %vm353, %vm466
        %vm579 = vmand %vm354, %vm467
        %vm580 = vmand %vm355, %vm468
        %vm581 = vmand %vm356, %vm469
        %vm582 = vmand %vm357, %vm470
        %vm583 = vmand %vm358, %vm471
        %vm584 = vmand %vm359, %vm472
        %vm585 = vmand %vm360, %vm473
        %vm586 = vmand %vm361, %vm474
        %vm587 = vmand %vm362, %vm475
        %vm588 = vmand %vm363, %vm476
        %vm589 = vmand %vm364, %vm477
        %vm590 = vmand %vm365, %vm478
        %vm591 = vmand %vm366, %vm479
        %vm592 = vmand %vm367, %vm480
        %vm593 = vmand %vm368, %vm481
        %vm594 = vmand %vm369, %vm482
        %vm595 = vmand %vm370, %vm483
        %vm596 = vmand %vm371, %vm484
        %vm597 = vmand %vm372, %vm485
        %vm598 = vmand %vm373, %vm486
        %vm599 = vmand %vm374, %vm487
        %vm600 = vmand %vm375, %vm488
        %vm601 = vmand %vm376, %vm489
        %vm602 = vmand %vm377, %vm490
        %vm603 = vmand %vm378, %vm491
        %vm604 = vmand %vm379, %vm492
        %vm605 = vmand %vm380, %vm493
        %vm606 = vmand %vm381, %vm494
        %vm607 = vmand %vm382, %vm495
        %vm608 = vmand %vm383, %vm496
        %vm609 = vmand %vm384, %vm497
        %vm610 = vmand %vm385, %vm498
        %vm611 = vmand %vm386, %vm499
        %vm612 = vmand %vm387, %vm500
        %vm613 = vmand %vm388, %vm501
        %vm614 = vmand %vm389, %vm502
        %vm615 = vmand %vm390, %vm503
        %vm616 = vmand %vm391, %vm504
        %vm617 = vmand %vm392, %vm505
        %vm618 = vmand %vm393, %vm506
        %vm619 = vmand %vm394, %vm507
        %vm620 = vmand %vm395, %vm508
        %vm621 = vmand %vm396, %vm509
        %vm622 = vmand %vm397, %vm510
        %vm623 = vmand %vm398, %vm511
        %vm624 = vmand %vm399, %vm512
        %vm625 = vmand %vm400, %vm513
        %vm626 = vmand %vm401, %vm514
        %vm627 = vmand %vm402, %vm515
        %vm628 = vmand %vm403, %vm516
        %vm629 = vmand %vm404, %vm517
        %vm630 = vmand %vm405, %vm518
        %vm631 = vmand %vm406, %vm519
        %vm632 = vmand %vm407, %vm520
        %vm633 = vmand %vm408, %vm521
        %vm634 = vmand %vm409, %vm522
        %vm635 = vmand %vm410, %vm523
        %vm636 = vmand %vm411, %vm524
        %vm637 = vmand %vm412, %vm525
        %vm638 = vmand %vm413, %vm526
        %vm639 = vmand %vm414, %vm527
        %vm640 = vmand %vm415, %vm528
        %vm641 = vmand %vm416, %vm529
        %vm642 = vmand %vm417, %vm530
        %vm643 = vmand %vm418, %vm531
        %vm644 = vmand %vm419, %vm532
        %vm645 = vmand %vm420, %vm533
        %vm646 = vmand %vm421, %vm534
        %vm647 = vmand %vm422, %vm535
        %vm648 = vmand %vm423, %vm536
        %vm649 = vmand %vm424, %vm537
        %vm650 = vmand %vm425, %vm538
        %vm651 = vmand %vm426, %vm539
        %vm652 = vmand %vm427, %vm540
        %vm653 = vmand %vm428, %vm541
        %vm654 = vmand %vm429, %vm542
        %vm655 = vmand %vm430, %vm543
        %vm656 = vmand %vm431, %vm544
        %vm657 = vmand %vm432, %vm545
        %vm658 = vmand %vm433, %vm546
        %vm659 = vmand %vm434, %vm547
        %vm660 = vmand %vm435, %vm548
        %vm661 = vmand %vm436, %vm549
        %vm662 = vmand %vm437, %vm550
        %vm663 = vmand %vm438, %vm551
        %vm664 = vmand %vm439, %vm552
        %vm665 = vmand %vm440, %vm553
        %vm666 = vmand %vm441, %vm554
        %vm667 = vmand %vm442, %vm555
        %vm668 = vmand %vm443, %vm556
        %vm669 = vmand %vm444, %vm557
        %vm670 = vmand %vm445, %vm558
        %vm671 = vmand %vm446, %vm559
        %vm672 = vmand %vm447, %vm560
        %vm673 = vmand %vm448, %vm561
        %vm674 = vmand %vm449, %vm562
        %vm675 = vmand %vm450, %vm563
        %vm676 = vmand %vm451, %vm564
        %v677 = vsel %vm565, 1, 0
        %v678 = vsel %vm566, 1, 0
        %v679 = vsel %vm567, 1, 0
        %v680 = vsel %vm568, 1, 0
        %v681 = vsel %vm569, 1, 0
        %v682 = vsel %vm570, 1, 0
        %v683 = vsel %vm571, 1, 0
        %v684 = vsel %vm572, 1, 0
        %v685 = vsel %vm573, 1, 0
        %v686 = vsel %vm574, 1, 0
        %v687 = vsel %vm575, 1, 0
        %v688 = vsel %vm576, 1, 0
        %v689 = vsel %vm577, 1, 0
        %v690 = vsel %vm578, 1, 0
        %v691 = vsel %vm579, 1, 0
        %v692 = vsel %vm580, 1, 0
        %v693 = vsel %vm581, 1, 0
        %v694 = vsel %vm582, 1, 0
        %v695 = vsel %vm583, 1, 0
        %v696 = vsel %vm584, 1, 0
        %v697 = vsel %vm585, 1, 0
        %v698 = vsel %vm586, 1, 0
        %v699 = vsel %vm587, 1, 0
        %v700 = vsel %vm588, 1, 0
        %v701 = vsel %vm589, 1, 0
        %v702 = vsel %vm590, 1, 0
        %v703 = vsel %vm591, 1, 0
        %v704 = vsel %vm592, 1, 0
        %v705 = vsel %vm593, 1, 0
        %v706 = vsel %vm594, 1, 0
        %v707 = vsel %vm595, 1, 0
        %v708 = vsel %vm596, 1, 0
        %v709 = vsel %vm597, 1, 0
        %v710 = vsel %vm598, 1, 0
        %v711 = vsel %vm599, 1, 0
        %v712 = vsel %vm600, 1, 0
        %v713 = vsel %vm601, 1, 0
        %v714 = vsel %vm602, 1, 0
        %v715 = vsel %vm603, 1, 0
        %v716 = vsel %vm604, 1, 0
        %v717 = vsel %vm605, 1, 0
        %v718 = vsel %vm606, 1, 0
        %v719 = vsel %vm607, 1, 0
        %v720 = vsel %vm608, 1, 0
        %v721 = vsel %vm609, 1, 0
        %v722 = vsel %vm610, 1, 0
        %v723 = vsel %vm611, 1, 0
        %v724 = vsel %vm612, 1, 0
        %v725 = vsel %vm613, 1, 0
        %v726 = vsel %vm614, 1, 0
        %v727 = vsel %vm615, 1, 0
        %v728 = vsel %vm616, 1, 0
        %v729 = vsel %vm617, 1, 0
        %v730 = vsel %vm618, 1, 0
        %v731 = vsel %vm619, 1, 0
        %v732 = vsel %vm620, 1, 0
        %v733 = vsel %vm621, 1, 0
        %v734 = vsel %vm622, 1, 0
        %v735 = vsel %vm623, 1, 0
        %v736 = vsel %vm624, 1, 0
        %v737 = vsel %vm625, 1, 0
        %v738 = vsel %vm626, 1, 0
        %v739 = vsel %vm627, 1, 0
        %v740 = vsel %vm628, 1, 0
        %v741 = vsel %vm629, 1, 0
        %v742 = vsel %vm630, 1, 0
        %v743 = vsel %vm631, 1, 0
        %v744 = vsel %vm632, 1, 0
        %v745 = vsel %vm633, 1, 0
        %v746 = vsel %vm634, 1, 0
        %v747 = vsel %vm635, 1, 0
        %v748 = vsel %vm636, 1, 0
        %v749 = vsel %vm637, 1, 0
        %v750 = vsel %vm638, 1, 0
        %v751 = vsel %vm639, 1, 0
        %v752 = vsel %vm640, 1, 0
        %v753 = vsel %vm641, 1, 0
        %v754 = vsel %vm642, 1, 0
        %v755 = vsel %vm643, 1, 0
        %v756 = vsel %vm644, 1, 0
        %v757 = vsel %vm645, 1, 0
        %v758 = vsel %vm646, 1, 0
        %v759 = vsel %vm647, 1, 0
        %v760 = vsel %vm648, 1, 0
        %v761 = vsel %vm649, 1, 0
        %v762 = vsel %vm650, 1, 0
        %v763 = vsel %vm651, 1, 0
        %v764 = vsel %vm652, 1, 0
        %v765 = vsel %vm653, 1, 0
        %v766 = vsel %vm654, 1, 0
        %v767 = vsel %vm655, 1, 0
        %v768 = vsel %vm656, 1, 0
        %v769 = vsel %vm657, 1, 0
        %v770 = vsel %vm658, 1, 0
        %v771 = vsel %vm659, 1, 0
        %v772 = vsel %vm660, 1, 0
        %v773 = vsel %vm661, 1, 0
        %v774 = vsel %vm662, 1, 0
        %v775 = vsel %vm663, 1, 0
        %v776 = vsel %vm664, 1, 0
        %v777 = vsel %vm665, 1, 0
        %v778 = vsel %vm666, 1, 0
        %v779 = vsel %vm667, 1, 0
        %v780 = vsel %vm668, 1, 0
        %v781 = vsel %vm669, 1, 0
        %v782 = vsel %vm670, 1, 0
        %v783 = vsel %vm671, 1, 0
        %v784 = vsel %vm672, 1, 0
        %v785 = vsel %vm673, 1, 0
        %v786 = vsel %vm674, 1, 0
        %v787 = vsel %vm675, 1, 0
        %v788 = vsel %vm676, 1, 0
        %v789 = vcvt.s32.f32 %v677
        %v790 = vcvt.s32.f32 %v678
        %v791 = vcvt.s32.f32 %v679
        %v792 = vcvt.s32.f32 %v680
        %v793 = vcvt.s32.f32 %v681
        %v794 = vcvt.s32.f32 %v682
        %v795 = vcvt.s32.f32 %v683
        %v796 = vcvt.s32.f32 %v684
        %v797 = vcvt.s32.f32 %v685
        %v798 = vcvt.s32.f32 %v686
        %v799 = vcvt.s32.f32 %v687
        %v800 = vcvt.s32.f32 %v688
        %v801 = vcvt.s32.f32 %v689
        %v802 = vcvt.s32.f32 %v690
        %v803 = vcvt.s32.f32 %v691
        %v804 = vcvt.s32.f32 %v692
        %v805 = vcvt.s32.f32 %v693
        %v806 = vcvt.s32.f32 %v694
        %v807 = vcvt.s32.f32 %v695
        %v808 = vcvt.s32.f32 %v696
        %v809 = vcvt.s32.f32 %v697
        %v810 = vcvt.s32.f32 %v698
        %v811 = vcvt.s32.f32 %v699
        %v812 = vcvt.s32.f32 %v700
        %v813 = vcvt.s32.f32 %v701
        %v814 = vcvt.s32.f32 %v702
        %v815 = vcvt.s32.f32 %v703
        %v816 = vcvt.s32.f32 %v704
        %v817 = vcvt.s32.f32 %v705
        %v818 = vcvt.s32.f32 %v706
        %v819 = vcvt.s32.f32 %v707
        %v820 = vcvt.s32.f32 %v708
        %v821 = vcvt.s32.f32 %v709
        %v822 = vcvt.s32.f32 %v710
        %v823 = vcvt.s32.f32 %v711
        %v824 = vcvt.s32.f32 %v712
        %v825 = vcvt.s32.f32 %v713
        %v826 = vcvt.s32.f32 %v714
        %v827 = vcvt.s32.f32 %v715
        %v828 = vcvt.s32.f32 %v716
        %v829 = vcvt.s32.f32 %v717
        %v830 = vcvt.s32.f32 %v718
        %v831 = vcvt.s32.f32 %v719
        %v832 = vcvt.s32.f32 %v720
        %v833 = vcvt.s32.f32 %v721
        %v834 = vcvt.s32.f32 %v722
        %v835 = vcvt.s32.f32 %v723
        %v836 = vcvt.s32.f32 %v724
        %v837 = vcvt.s32.f32 %v725
        %v838 = vcvt.s32.f32 %v726
        %v839 = vcvt.s32.f32 %v727
        %v840 = vcvt.s32.f32 %v728
        %v841 = vcvt.s32.f32 %v729
        %v842 = vcvt.s32.f32 %v730
        %v843 = vcvt.s32.f32 %v731
        %v844 = vcvt.s32.f32 %v732
        %v845 = vcvt.s32.f32 %v733
        %v846 = vcvt.s32.f32 %v734
        %v847 = vcvt.s32.f32 %v735
        %v848 = vcvt.s32.f32 %v736
        %v849 = vcvt.s32.f32 %v737
        %v850 = vcvt.s32.f32 %v738
        %v851 = vcvt.s32.f32 %v739
        %v852 = vcvt.s32.f32 %v740
        %v853 = vcvt.s32.f32 %v741
        %v854 = vcvt.s32.f32 %v742
        %v855 = vcvt.s32.f32 %v743
        %v856 = vcvt.s32.f32 %v744
        %v857 = vcvt.s32.f32 %v745
        %v858 = vcvt.s32.f32 %v746
        %v859 = vcvt.s32.f32 %v747
        %v860 = vcvt.s32.f32 %v748
        %v861 = vcvt.s32.f32 %v749
        %v862 = vcvt.s32.f32 %v750
        %v863 = vcvt.s32.f32 %v751
        %v864 = vcvt.s32.f32 %v752
        %v865 = vcvt.s32.f32 %v753
        %v866 = vcvt.s32.f32 %v754
        %v867 = vcvt.s32.f32 %v755
        %v868 = vcvt.s32.f32 %v756
        %v869 = vcvt.s32.f32 %v757
        %v870 = vcvt.s32.f32 %v758
        %v871 = vcvt.s32.f32 %v759
        %v872 = vcvt.s32.f32 %v760
        %v873 = vcvt.s32.f32 %v761
        %v874 = vcvt.s32.f32 %v762
        %v875 = vcvt.s32.f32 %v763
        %v876 = vcvt.s32.f32 %v764
        %v877 = vcvt.s32.f32 %v765
        %v878 = vcvt.s32.f32 %v766
        %v879 = vcvt.s32.f32 %v767
        %v880 = vcvt.s32.f32 %v768
        %v881 = vcvt.s32.f32 %v769
        %v882 = vcvt.s32.f32 %v770
        %v883 = vcvt.s32.f32 %v771
        %v884 = vcvt.s32.f32 %v772
        %v885 = vcvt.s32.f32 %v773
        %v886 = vcvt.s32.f32 %v774
        %v887 = vcvt.s32.f32 %v775
        %v888 = vcvt.s32.f32 %v776
        %v889 = vcvt.s32.f32 %v777
        %v890 = vcvt.s32.f32 %v778
        %v891 = vcvt.s32.f32 %v779
        %v892 = vcvt.s32.f32 %v780
        %v893 = vcvt.s32.f32 %v781
        %v894 = vcvt.s32.f32 %v782
        %v895 = vcvt.s32.f32 %v783
        %v896 = vcvt.s32.f32 %v784
        %v897 = vcvt.s32.f32 %v785
        %v898 = vcvt.s32.f32 %v786
        %v899 = vcvt.s32.f32 %v787
        %v900 = vcvt.s32.f32 %v788
        %901 = vmatprep.subr.mxu0 0.0
        %902 = vmatpush1.msra.mxu0 %v804
        %903 = vmatprep.subr.mxu0 0.0
        %904 = vmatpush1.msra.mxu0 %v803
        %905 = vmatprep.subr.mxu0 0.0
        %906 = vmatpush1.msra.mxu0 %v802
        %907 = vmatprep.subr.mxu0 0.0
        %908 = vmatpush1.msra.mxu0 %v801
        %909 = vmatprep.subr.mxu0 0.0
        %910 = vmatpush1.msra.mxu0 %v800
        %911 = vmatprep.subr.mxu0 0.0
        %912 = vmatpush1.msra.mxu0 %v799
        %913 = vmatprep.subr.mxu0 0.0
        %914 = vmatpush1.msra.mxu0 %v798
        %915 = vmatprep.subr.mxu0 0.0
        %916 = vmatpush1.msra.mxu0 %v797
        %917 = vmatprep.subr.mxu0 0.0
        %918 = vmatpush1.msra.mxu0 %v796
        %919 = vmatprep.subr.mxu0 0.0
        %920 = vmatpush1.msra.mxu0 %v795
        %921 = vmatprep.subr.mxu0 0.0
        %922 = vmatpush1.msra.mxu0 %v794
        %923 = vmatprep.subr.mxu0 0.0
        %924 = vmatpush1.msra.mxu0 %v793
        %925 = vmatprep.subr.mxu0 0.0
        %926 = vmatpush1.msra.mxu0 %v792
        %927 = vmatprep.subr.mxu0 0.0
        %928 = vmatpush1.msra.mxu0 %v791
        %929 = vmatprep.subr.mxu0 0.0
        %930 = vmatpush1.msra.mxu0 %v790
        %931 = vmatprep.subr.mxu0 0.0
        %932 = vmatpush1.msra.mxu0 %v789
        %933 = vmatprep.subr.mxu0 0.0
        %934 = vmatpush2.msra.mxu0 %v820
        %935 = vmatprep.subr.mxu0 0.0
        %936 = vmatpush2.msra.mxu0 %v819
        %937 = vmatprep.subr.mxu0 0.0
        %938 = vmatpush2.msra.mxu0 %v818
        %939 = vmatprep.subr.mxu0 0.0
        %940 = vmatpush2.msra.mxu0 %v817
        %941 = vmatprep.subr.mxu0 0.0
        %942 = vmatpush2.msra.mxu0 %v816
        %943 = vmatprep.subr.mxu0 0.0
        %944 = vmatpush2.msra.mxu0 %v815
        %945 = vmatprep.subr.mxu0 0.0
        %946 = vmatpush2.msra.mxu0 %v814
        %947 = vmatprep.subr.mxu0 0.0
        %948 = vmatpush2.msra.mxu0 %v813
        %949 = vmatprep.subr.mxu0 0.0
        %950 = vmatpush2.msra.mxu0 %v812
        %951 = vmatprep.subr.mxu0 0.0
        %952 = vmatpush2.msra.mxu0 %v811
        %953 = vmatprep.subr.mxu0 0.0
        %954 = vmatpush2.msra.mxu0 %v810
        %955 = vmatprep.subr.mxu0 0.0
        %956 = vmatpush2.msra.mxu0 %v809
        %957 = vmatprep.subr.mxu0 0.0
        %958 = vmatpush2.msra.mxu0 %v808
        %959 = vmatprep.subr.mxu0 0.0
        %960 = vmatpush2.msra.mxu0 %v807
        %961 = vmatprep.subr.mxu0 0.0
        %962 = vmatpush2.msra.mxu0 %v806
        %963 = vmatprep.subr.mxu0 0.0
        %964 = vmatpush2.msra.mxu0 %v805
        %965 = vmatprep.mubr.f32.mxu0 %v218
        %966 = vmatmul.mubr.f32.gmra.mxu0 %v217
        %v967 = vpop.f32.mrf.mxu0
        %v968 = vadd.f32 0.0, %v967
        %v969 = vpop.f32.mrf.mxu0
        %970 = vdwg.mxu0
        %971 = vmatprep.subr.mxu0 0.0
        %972 = vmatpush1.msra.mxu0 %v836
        %973 = vmatprep.subr.mxu0 0.0
        %974 = vmatpush1.msra.mxu0 %v835
        %975 = vmatprep.subr.mxu0 0.0
        %976 = vmatpush1.msra.mxu0 %v834
        %977 = vmatprep.subr.mxu0 0.0
        %978 = vmatpush1.msra.mxu0 %v833
        %979 = vmatprep.subr.mxu0 0.0
        %980 = vmatpush1.msra.mxu0 %v832
        %981 = vmatprep.subr.mxu0 0.0
        %982 = vmatpush1.msra.mxu0 %v831
        %983 = vmatprep.subr.mxu0 0.0
        %984 = vmatpush1.msra.mxu0 %v830
        %985 = vmatprep.subr.mxu0 0.0
        %986 = vmatpush1.msra.mxu0 %v829
        %987 = vmatprep.subr.mxu0 0.0
        %988 = vmatpush1.msra.mxu0 %v828
        %989 = vmatprep.subr.mxu0 0.0
        %990 = vmatpush1.msra.mxu0 %v827
        %991 = vmatprep.subr.mxu0 0.0
        %992 = vmatpush1.msra.mxu0 %v826
        %993 = vmatprep.subr.mxu0 0.0
        %994 = vmatpush1.msra.mxu0 %v825
        %995 = vmatprep.subr.mxu0 0.0
        %996 = vmatpush1.msra.mxu0 %v824
        %997 = vmatprep.subr.mxu0 0.0
        %998 = vmatpush1.msra.mxu0 %v823
        %999 = vmatprep.subr.mxu0 0.0
        %1000 = vmatpush1.msra.mxu0 %v822
        %1001 = vmatprep.subr.mxu0 0.0
        %1002 = vmatpush1.msra.mxu0 %v821
        %1003 = vmatprep.subr.mxu0 0.0
        %1004 = vmatpush2.msra.mxu0 %v852
        %1005 = vmatprep.subr.mxu0 0.0
        %1006 = vmatpush2.msra.mxu0 %v851
        %1007 = vmatprep.subr.mxu0 0.0
        %1008 = vmatpush2.msra.mxu0 %v850
        %1009 = vmatprep.subr.mxu0 0.0
        %1010 = vmatpush2.msra.mxu0 %v849
        %1011 = vmatprep.subr.mxu0 0.0
        %1012 = vmatpush2.msra.mxu0 %v848
        %1013 = vmatprep.subr.mxu0 0.0
        %1014 = vmatpush2.msra.mxu0 %v847
        %1015 = vmatprep.subr.mxu0 0.0
        %1016 = vmatpush2.msra.mxu0 %v846
        %1017 = vmatprep.subr.mxu0 0.0
        %1018 = vmatpush2.msra.mxu0 %v845
        %1019 = vmatprep.subr.mxu0 0.0
        %1020 = vmatpush2.msra.mxu0 %v844
        %1021 = vmatprep.subr.mxu0 0.0
        %1022 = vmatpush2.msra.mxu0 %v843
        %1023 = vmatprep.subr.mxu0 0.0
        %1024 = vmatpush2.msra.mxu0 %v842
        %1025 = vmatprep.subr.mxu0 0.0
        %1026 = vmatpush2.msra.mxu0 %v841
        %1027 = vmatprep.subr.mxu0 0.0
        %1028 = vmatpush2.msra.mxu0 %v840
        %1029 = vmatprep.subr.mxu0 0.0
        %1030 = vmatpush2.msra.mxu0 %v839
        %1031 = vmatprep.subr.mxu0 0.0
        %1032 = vmatpush2.msra.mxu0 %v838
        %1033 = vmatprep.subr.mxu0 0.0
        %1034 = vmatpush2.msra.mxu0 %v837
        %1035 = vmatprep.mubr.f32.mxu0 %v220
        %1036 = vmatmul.mubr.f32.gmra.mxu0 %v219
        %v1037 = vpop.f32.mrf.mxu0
        %v1038 = vadd.f32 %v968, %v1037
        %v1039 = vpop.f32.mrf.mxu0
        %1040 = vdwg.mxu0
        %1041 = vmatprep.subr.mxu0 0.0
        %1042 = vmatpush1.msra.mxu0 %v868
        %1043 = vmatprep.subr.mxu0 0.0
        %1044 = vmatpush1.msra.mxu0 %v867
        %1045 = vmatprep.subr.mxu0 0.0
        %1046 = vmatpush1.msra.mxu0 %v866
        %1047 = vmatprep.subr.mxu0 0.0
        %1048 = vmatpush1.msra.mxu0 %v865
        %1049 = vmatprep.subr.mxu0 0.0
        %1050 = vmatpush1.msra.mxu0 %v864
        %1051 = vmatprep.subr.mxu0 0.0
        %1052 = vmatpush1.msra.mxu0 %v863
        %1053 = vmatprep.subr.mxu0 0.0
        %1054 = vmatpush1.msra.mxu0 %v862
        %1055 = vmatprep.subr.mxu0 0.0
        %1056 = vmatpush1.msra.mxu0 %v861
        %1057 = vmatprep.subr.mxu0 0.0
        %1058 = vmatpush1.msra.mxu0 %v860
        %1059 = vmatprep.subr.mxu0 0.0
        %1060 = vmatpush1.msra.mxu0 %v859
        %1061 = vmatprep.subr.mxu0 0.0
        %1062 = vmatpush1.msra.mxu0 %v858
        %1063 = vmatprep.subr.mxu0 0.0
        %1064 = vmatpush1.msra.mxu0 %v857
        %1065 = vmatprep.subr.mxu0 0.0
        %1066 = vmatpush1.msra.mxu0 %v856
        %1067 = vmatprep.subr.mxu0 0.0
        %1068 = vmatpush1.msra.mxu0 %v855
        %1069 = vmatprep.subr.mxu0 0.0
        %1070 = vmatpush1.msra.mxu0 %v854
        %1071 = vmatprep.subr.mxu0 0.0
        %1072 = vmatpush1.msra.mxu0 %v853
        %1073 = vmatprep.subr.mxu0 0.0
        %1074 = vmatpush2.msra.mxu0 %v884
        %1075 = vmatprep.subr.mxu0 0.0
        %1076 = vmatpush2.msra.mxu0 %v883
        %1077 = vmatprep.subr.mxu0 0.0
        %1078 = vmatpush2.msra.mxu0 %v882
        %1079 = vmatprep.subr.mxu0 0.0
        %1080 = vmatpush2.msra.mxu0 %v881
        %1081 = vmatprep.subr.mxu0 0.0
        %1082 = vmatpush2.msra.mxu0 %v880
        %1083 = vmatprep.subr.mxu0 0.0
        %1084 = vmatpush2.msra.mxu0 %v879
        %1085 = vmatprep.subr.mxu0 0.0
        %1086 = vmatpush2.msra.mxu0 %v878
        %1087 = vmatprep.subr.mxu0 0.0
        %1088 = vmatpush2.msra.mxu0 %v877
        %1089 = vmatprep.subr.mxu0 0.0
        %1090 = vmatpush2.msra.mxu0 %v876
        %1091 = vmatprep.subr.mxu0 0.0
        %1092 = vmatpush2.msra.mxu0 %v875
        %1093 = vmatprep.subr.mxu0 0.0
        %1094 = vmatpush2.msra.mxu0 %v874
        %1095 = vmatprep.subr.mxu0 0.0
        %1096 = vmatpush2.msra.mxu0 %v873
        %1097 = vmatprep.subr.mxu0 0.0
        %1098 = vmatpush2.msra.mxu0 %v872
        %1099 = vmatprep.subr.mxu0 0.0
        %1100 = vmatpush2.msra.mxu0 %v871
        %1101 = vmatprep.subr.mxu0 0.0
        %1102 = vmatpush2.msra.mxu0 %v870
        %1103 = vmatprep.subr.mxu0 0.0
        %1104 = vmatpush2.msra.mxu0 %v869
        %1105 = vmatprep.mubr.f32.mxu0 %v222
        %1106 = vmatmul.mubr.f32.gmra.mxu0 %v221
        %v1107 = vpop.f32.mrf.mxu0
        %v1108 = vadd.f32 %v1038, %v1107
        %v1109 = vpop.f32.mrf.mxu0
        %1110 = vdwg.mxu0
        %1111 = vmatprep.subr.mxu0 0.0
        %1112 = vmatpush1.msra.mxu0 %v900
        %1113 = vmatprep.subr.mxu0 0.0
        %1114 = vmatpush1.msra.mxu0 %v899
        %1115 = vmatprep.subr.mxu0 0.0
        %1116 = vmatpush1.msra.mxu0 %v898
        %1117 = vmatprep.subr.mxu0 0.0
        %1118 = vmatpush1.msra.mxu0 %v897
        %1119 = vmatprep.subr.mxu0 0.0
        %1120 = vmatpush1.msra.mxu0 %v896
        %1121 = vmatprep.subr.mxu0 0.0
        %1122 = vmatpush1.msra.mxu0 %v895
        %1123 = vmatprep.subr.mxu0 0.0
        %1124 = vmatpush1.msra.mxu0 %v894
        %1125 = vmatprep.subr.mxu0 0.0
        %1126 = vmatpush1.msra.mxu0 %v893
        %1127 = vmatprep.subr.mxu0 0.0
        %1128 = vmatpush1.msra.mxu0 %v892
        %1129 = vmatprep.subr.mxu0 0.0
        %1130 = vmatpush1.msra.mxu0 %v891
        %1131 = vmatprep.subr.mxu0 0.0
        %1132 = vmatpush1.msra.mxu0 %v890
        %1133 = vmatprep.subr.mxu0 0.0
        %1134 = vmatpush1.msra.mxu0 %v889
        %1135 = vmatprep.subr.mxu0 0.0
        %1136 = vmatpush1.msra.mxu0 %v888
        %1137 = vmatprep.subr.mxu0 0.0
        %1138 = vmatpush1.msra.mxu0 %v887
        %1139 = vmatprep.subr.mxu0 0.0
        %1140 = vmatpush1.msra.mxu0 %v886
        %1141 = vmatprep.subr.mxu0 0.0
        %1142 = vmatpush1.msra.mxu0 %v885
        %1143 = vmatprep.subr.mxu0 0.0
        %1144 = vmatpush2.msra.mxu0 0.0
        %1145 = vmatprep.subr.mxu0 0.0
        %1146 = vmatpush2.msra.mxu0 0.0
        %1147 = vmatprep.subr.mxu0 0.0
        %1148 = vmatpush2.msra.mxu0 0.0
        %1149 = vmatprep.subr.mxu0 0.0
        %1150 = vmatpush2.msra.mxu0 0.0
        %1151 = vmatprep.subr.mxu0 0.0
        %1152 = vmatpush2.msra.mxu0 0.0
        %1153 = vmatprep.subr.mxu0 0.0
        %1154 = vmatpush2.msra.mxu0 0.0
        %1155 = vmatprep.subr.mxu0 0.0
        %1156 = vmatpush2.msra.mxu0 0.0
        %1157 = vmatprep.subr.mxu0 0.0
        %1158 = vmatpush2.msra.mxu0 0.0
        %1159 = vmatprep.subr.mxu0 0.0
        %1160 = vmatpush2.msra.mxu0 0.0
        %1161 = vmatprep.subr.mxu0 0.0
        %1162 = vmatpush2.msra.mxu0 0.0
        %1163 = vmatprep.subr.mxu0 0.0
        %1164 = vmatpush2.msra.mxu0 0.0
        %1165 = vmatprep.subr.mxu0 0.0
        %1166 = vmatpush2.msra.mxu0 0.0
        %1167 = vmatprep.subr.mxu0 0.0
        %1168 = vmatpush2.msra.mxu0 0.0
        %1169 = vmatprep.subr.mxu0 0.0
        %1170 = vmatpush2.msra.mxu0 0.0
        %1171 = vmatprep.subr.mxu0 0.0
        %1172 = vmatpush2.msra.mxu0 0.0
        %1173 = vmatprep.subr.mxu0 0.0
        %1174 = vmatpush2.msra.mxu0 0.0
        %1175 = vmatprep.mubr.f32.mxu0 0.0
        %1176 = vmatmul.mubr.f32.gmra.mxu0 %v223
        %v1177 = vpop.f32.mrf.mxu0
        %v1178 = vadd.f32 %v1108, %v1177
        %v1179 = vpop.f32.mrf.mxu0
        %1180 = vdwg.mxu0
        %1181 = vst [vmem:[%s172] sm:$0xff] %v1178
        %s1182 = sand.u32 %s75, 1
        %s1183 = scalar_lea.sflag [#allocation4], %s1182
        %s1184 = sand.u32 %s75, 1
        %s1185 = smul.addr %s1184, 8
        %s1186 = scalar_lea.vmem [#allocation7], %s1185
        // Predicated region
        $region37: #{tpu_custom_call.1} parent=27 // pred_check
          %p1187 = pneg %p85
        $region38: #{tpu_custom_call.1} parent=27 // pred_check_branch
          %1189 = sbr.rel (%p1187) target = $region40
        $region39: #{tpu_custom_call.1} parent=27 // pred_region
          %s1191 = ssub.s32 128, 128
          %1192 = vsyncadd %s1183, %s1191
          %s1193 = smul.addr %s20, 128
          %s1194 = scalar_lea.hbm %s2, %s1193
          %s1196 = sshll.u32 %s1186, 4
          %s1197 = int_to_ptr.vmem [resolvable:$true] %s1196
          %1199 = dma.vmem_to_hbm [thread:$0]  %s1197, 128, %s1194, %s1183
        $region40: #{tpu_custom_call.1} parent=27 // pred_fallthru
          _
      $region28: #{tpu_custom_call.1} parent=5 // pred_fallthru
        _
      %p1200 = scmp.le.s32.totalorder 2, %s15
      // Predicated region
      $region41: #{tpu_custom_call.1} parent=5 // pred_check
        %p1201 = pneg %p1200
      $region42: #{tpu_custom_call.1} parent=5 // pred_check_branch
        %1203 = sbr.rel (%p1201) target = $region44
      $region43: #{tpu_custom_call.1} parent=5 // pred_region
        %s1204 = ssub.s32 %s15, 2
        // Predicated region
        $region45: #{tpu_custom_call.1} parent=43 // pred_check
          %p1205 = pneg %p91
        $region46: #{tpu_custom_call.1} parent=43 // pred_check_branch
          %1207 = sbr.rel (%p1205) target = $region48
        $region47: #{tpu_custom_call.1} parent=43 // pred_region
          %s1208 = sand.u32 %s76, 1
          %s1209 = scalar_lea.sflag [#allocation4], %s1208
          %s1210 = sand.u32 %s76, 1
          %s1211 = smul.addr %s1210, 8
          %s1212 = scalar_lea.vmem [#allocation7], %s1211
          %1213 = dma.done %s1209, 128
        $region48: #{tpu_custom_call.1} parent=43 // pred_fallthru
          _
      $region44: #{tpu_custom_call.1} parent=5 // pred_fallthru
        _
    $region6: #{tpu_custom_call.1} parent=1 // loop_footer
      %s19 = sadd.s32 1, %s15
    $region7: #{tpu_custom_call.1} parent=1 // loop_footer_branch
      %14 = sbr.rel target = $region3
    $region8: #{tpu_custom_call.1} parent=1 // loop_exit
      _
    %1214 = vsyncpa [#allocation3], 1
    %s1215 = scalar_lea.sflag [#allocation3], 1
    %1216 = vsyncpa %s1215, 1
    %1217 = vsyncpa [#allocation6], 1
    %1218 = vsyncpa [#allocation4], 1
    %s1219 = scalar_lea.sflag [#allocation4], 1
    %1220 = vsyncpa %s1219, 1

</llo_original>
